<compile_context>
chip_gen: v7x
topology: tpu7x:2x2x1
jax: 0.10.0
libtpu: 0.0.40
codegen_flags: <defaults>
</compile_context>

<pallas_src>
import functools

import jax
import jax.numpy as jnp
from jax.experimental import pallas as pl
from jax.experimental.pallas import tpu as pltpu


def _round_up(v, m):
    return ((v + m - 1) // m) * m


def mlp_kernel(x_ref, w1_ref, b1_ref, w2_ref, b2_ref, w3_ref, b3_ref, o_ref):
    # In-kernel f32 -> bf16 cast of the activation stream (no wrapper cast pass).
    x = x_ref[...].astype(jnp.bfloat16)

    # fc1 + ReLU (dropout == identity in eval mode). bf16 operands, f32 accum.
    h1 = jnp.dot(x, w1_ref[...], preferred_element_type=jnp.float32)
    h1 = jnp.maximum(h1 + b1_ref[...], 0.0)

    # fc2 + ReLU (dropout == identity in eval mode).
    h2 = jnp.dot(h1.astype(jnp.bfloat16), w2_ref[...],
                 preferred_element_type=jnp.float32)
    h2 = jnp.maximum(h2 + b2_ref[...], 0.0)

    # fc3 (logits, no activation). (tb, 47) masked store — free under DMA slack.
    out = jnp.dot(h2.astype(jnp.bfloat16), w3_ref[...],
                  preferred_element_type=jnp.float32)
    o_ref[...] = (out + b3_ref[...]).astype(o_ref.dtype)


def prepare_params(params):
    """One-time param preparation (hoisted out of the per-call path).
    Weights -> bf16 for the MXU; biases stay f32 for the post-matmul VPU path."""
    return {
        "w1": params["w1"].astype(jnp.bfloat16),
        "b1": params["b1"].astype(jnp.float32),
        "w2": params["w2"].astype(jnp.bfloat16),
        "b2": params["b2"].astype(jnp.float32),
        "w3": params["w3"].astype(jnp.bfloat16),
        "b3": params["b3"].astype(jnp.float32),
    }


@functools.partial(jax.jit, static_argnames=("block_b",))
def video_classifier_forward(x, params, block_b=4096):
    """x: (B, input_dim) float32. params: output of prepare_params (bf16 weights
    stored as (in, out), f32 biases as (1, out)). Returns (B, output_dim) f32."""
    w1, b1 = params["w1"], params["b1"]
    w2, b2 = params["w2"], params["b2"]
    w3, b3 = params["w3"], params["b3"]

    B, input_dim = x.shape
    hidden_dim = w1.shape[1]
    out_dim = w3.shape[1]

    # Batch tile: always a multiple of 8 sublanes (regardless of caller block_b),
    # large enough to amortize per-step pipeline overhead.
    tb = _round_up(min(block_b, B), 8)
    # Keep >= 2 grid steps for large batches so ("parallel",) can actually shard
    # across v7x's two TensorCores.
    if B >= 2048:
        tb = min(tb, _round_up((B + 1) // 2, 8))
    b_pad = _round_up(B, tb)
    if b_pad != B:
        x = jnp.pad(x, ((0, b_pad - B), (0, 0)))

    grid = (b_pad // tb,)

    flops = 2 * b_pad * (input_dim * hidden_dim
                         + hidden_dim * hidden_dim
                         + hidden_dim * out_dim)
    bytes_accessed = (b_pad * input_dim * 4                      # x (f32, read once)
                      + (w1.size + w2.size + w3.size) * 2        # bf16 weights
                      + (b1.size + b2.size + b3.size) * 4        # f32 biases
                      + b_pad * out_dim * 4)                     # f32 logits

    out = pl.pallas_call(
        mlp_kernel,
        out_shape=jax.ShapeDtypeStruct((b_pad, out_dim), jnp.float32),
        grid=grid,
        in_specs=[
            pl.BlockSpec((tb, input_dim), lambda i: (i, 0)),          # x tile (f32)
            pl.BlockSpec((input_dim, hidden_dim), lambda i: (0, 0)),  # w1 resident
            pl.BlockSpec((1, hidden_dim), lambda i: (0, 0)),          # b1
            pl.BlockSpec((hidden_dim, hidden_dim), lambda i: (0, 0)), # w2
            pl.BlockSpec((1, hidden_dim), lambda i: (0, 0)),          # b2
            pl.BlockSpec((hidden_dim, out_dim), lambda i: (0, 0)),    # w3
            pl.BlockSpec((1, out_dim), lambda i: (0, 0)),             # b3
        ],
        out_specs=pl.BlockSpec((tb, out_dim), lambda i: (i, 0)),
        compiler_params=pltpu.CompilerParams(
            dimension_semantics=("parallel",),
            vmem_limit_bytes=48 << 20),
        cost_estimate=pl.CostEstimate(flops=int(flops), transcendentals=0,
                                      bytes_accessed=int(bytes_accessed)),
    )(x, w1, b1, w2, b2, w3, b3)

    if b_pad != B:
        out = out[:B]
    return out


def init_params(key, input_dim=384, hidden_dim=128, output_dim=47):
    """Deterministic synthetic init (PyTorch Linear-like uniform ranges), f32."""
    ks = jax.random.split(key, 6)

    def linear(kw, kb, fan_in, fan_out):
        bound = 1.0 / jnp.sqrt(fan_in)
        # Stored as (in, out) so the kernel does x @ W (== torch x @ W.T).
        w = jax.random.uniform(kw, (fan_in, fan_out), jnp.float32, -bound, bound)
        b = jax.random.uniform(kb, (1, fan_out), jnp.float32, -bound, bound)
        return w, b

    w1, b1 = linear(ks[0], ks[1], input_dim, hidden_dim)
    w2, b2 = linear(ks[2], ks[3], hidden_dim, hidden_dim)
    w3, b3 = linear(ks[4], ks[5], hidden_dim, output_dim)
    return {"w1": w1, "b1": b1, "w2": w2, "b2": b2, "w3": w3, "b3": b3}


if __name__ == "__main__":
    key = jax.random.PRNGKey(0)
    k_params, k_x = jax.random.split(key)

    INPUT_DIM, HIDDEN_DIM, OUTPUT_DIM, BATCH = 384, 128, 47, 8

    params_f32 = init_params(k_params, INPUT_DIM, HIDDEN_DIM, OUTPUT_DIM)
    kparams = prepare_params(params_f32)          # one-time prep (bf16 weights)
    x = jax.random.normal(k_x, (BATCH, INPUT_DIM), jnp.float32)

    out = video_classifier_forward(x, kparams)
    out = jax.block_until_ready(out)

    # Reference (pure JAX) following the same bf16-operand / f32-accum recipe.
    xb = x.astype(jnp.bfloat16)
    h1 = jnp.maximum(
        jnp.dot(xb, kparams["w1"], preferred_element_type=jnp.float32)
        + kparams["b1"], 0.0)
    h2 = jnp.maximum(
        jnp.dot(h1.astype(jnp.bfloat16), kparams["w2"],
                preferred_element_type=jnp.float32) + kparams["b2"], 0.0)
    ref = jnp.dot(h2.astype(jnp.bfloat16), kparams["w3"],
                  preferred_element_type=jnp.float32) + kparams["b3"]

    assert out.shape == (BATCH, OUTPUT_DIM)
    assert jnp.allclose(out, ref, atol=5e-3, rtol=5e-3)

    print("KERNEL_OK")
</pallas_src>

<mosaic_0001>
module attributes {stable_mosaic.version = 11 : i64} {
  func.func @mlp_kernel(%arg0: i32, %arg1: memref<8x384xf32, #tpu.memory_space<vmem>>, %arg2: memref<384x128xbf16, #tpu.memory_space<vmem>>, %arg3: memref<1x128xf32, #tpu.memory_space<vmem>>, %arg4: memref<128x128xbf16, #tpu.memory_space<vmem>>, %arg5: memref<1x128xf32, #tpu.memory_space<vmem>>, %arg6: memref<128x47xbf16, #tpu.memory_space<vmem>>, %arg7: memref<1x47xf32, #tpu.memory_space<vmem>>, %arg8: memref<8x47xf32, #tpu.memory_space<vmem>>) attributes {dimension_semantics = [#tpu.dimension_semantics<parallel>], iteration_bounds = array<i64: 1>, scalar_prefetch = 0 : i64, scratch_operands = 0 : i64, tpu.core_type = #tpu.core_type<tc>, window_params = [{transform_indices = @transform_0, window_bounds = array<i64: 8, 384>}, {pipeline_mode = #tpu.pipeline_mode<synchronous>, transform_indices = @transform_1, window_bounds = array<i64: 384, 128>}, {pipeline_mode = #tpu.pipeline_mode<synchronous>, transform_indices = @transform_2, window_bounds = array<i64: 1, 128>}, {pipeline_mode = #tpu.pipeline_mode<synchronous>, transform_indices = @transform_3, window_bounds = array<i64: 128, 128>}, {pipeline_mode = #tpu.pipeline_mode<synchronous>, transform_indices = @transform_4, window_bounds = array<i64: 1, 128>}, {pipeline_mode = #tpu.pipeline_mode<synchronous>, transform_indices = @transform_5, window_bounds = array<i64: 128, 47>}, {pipeline_mode = #tpu.pipeline_mode<synchronous>, transform_indices = @transform_6, window_bounds = array<i64: 1, 47>}, {transform_indices = @transform_7, window_bounds = array<i64: 8, 47>}]} {
    %c0 = arith.constant 0 : index
    %c0_0 = arith.constant 0 : index
    %0 = vector.load %arg1[%c0, %c0_0] : memref<8x384xf32, #tpu.memory_space<vmem>>, vector<8x384xf32>
    %1 = arith.truncf %0 : vector<8x384xf32> to vector<8x384xbf16>
    %c0_1 = arith.constant 0 : index
    %c0_2 = arith.constant 0 : index
    %2 = vector.load %arg2[%c0_1, %c0_2] : memref<384x128xbf16, #tpu.memory_space<vmem>>, vector<384x128xbf16>
    %cst = arith.constant dense<0.000000e+00> : vector<8x128xf32>
    %3 = tpu.matmul %1, %2, %cst {dimension_numbers = #tpu.dot_dimension_numbers<[1], [0], [0], [1], [0, 0, 1, 1], [], []>} : vector<8x384xbf16>, vector<384x128xbf16>, vector<8x128xf32> -> vector<8x128xf32>
    %c0_3 = arith.constant 0 : index
    %c0_4 = arith.constant 0 : index
    %4 = vector.load %arg3[%c0_3, %c0_4] : memref<1x128xf32, #tpu.memory_space<vmem>>, vector<1x128xf32>
    %5 = vector.broadcast %4 : vector<1x128xf32> to vector<8x128xf32>
    %6 = arith.addf %3, %5 : vector<8x128xf32>
    %cst_5 = arith.constant 0.000000e+00 : f32
    %7 = vector.broadcast %cst_5 : f32 to vector<8x128xf32>
    %8 = arith.maximumf %6, %7 : vector<8x128xf32>
    %9 = arith.truncf %8 : vector<8x128xf32> to vector<8x128xbf16>
    %c0_6 = arith.constant 0 : index
    %c0_7 = arith.constant 0 : index
    %10 = vector.load %arg4[%c0_6, %c0_7] : memref<128x128xbf16, #tpu.memory_space<vmem>>, vector<128x128xbf16>
    %cst_8 = arith.constant dense<0.000000e+00> : vector<8x128xf32>
    %11 = tpu.matmul %9, %10, %cst_8 {dimension_numbers = #tpu.dot_dimension_numbers<[1], [0], [0], [1], [0, 0, 1, 1], [], []>} : vector<8x128xbf16>, vector<128x128xbf16>, vector<8x128xf32> -> vector<8x128xf32>
    %c0_9 = arith.constant 0 : index
    %c0_10 = arith.constant 0 : index
    %12 = vector.load %arg5[%c0_9, %c0_10] : memref<1x128xf32, #tpu.memory_space<vmem>>, vector<1x128xf32>
    %13 = vector.broadcast %12 : vector<1x128xf32> to vector<8x128xf32>
    %14 = arith.addf %11, %13 : vector<8x128xf32>
    %cst_11 = arith.constant 0.000000e+00 : f32
    %15 = vector.broadcast %cst_11 : f32 to vector<8x128xf32>
    %16 = arith.maximumf %14, %15 : vector<8x128xf32>
    %17 = arith.truncf %16 : vector<8x128xf32> to vector<8x128xbf16>
    %c0_12 = arith.constant 0 : index
    %c0_13 = arith.constant 0 : index
    %18 = vector.load %arg6[%c0_12, %c0_13] : memref<128x47xbf16, #tpu.memory_space<vmem>>, vector<128x47xbf16>
    %cst_14 = arith.constant dense<0.000000e+00> : vector<8x47xf32>
    %19 = tpu.matmul %17, %18, %cst_14 {dimension_numbers = #tpu.dot_dimension_numbers<[1], [0], [0], [1], [0, 0, 1, 1], [], []>} : vector<8x128xbf16>, vector<128x47xbf16>, vector<8x47xf32> -> vector<8x47xf32>
    %c0_15 = arith.constant 0 : index
    %c0_16 = arith.constant 0 : index
    %20 = vector.load %arg7[%c0_15, %c0_16] : memref<1x47xf32, #tpu.memory_space<vmem>>, vector<1x47xf32>
    %21 = vector.broadcast %20 : vector<1x47xf32> to vector<8x47xf32>
    %22 = arith.addf %19, %21 : vector<8x47xf32>
    %c0_17 = arith.constant 0 : index
    %c0_18 = arith.constant 0 : index
    %23 = vector.load %arg8[%c0_17, %c0_18] : memref<8x47xf32, #tpu.memory_space<vmem>>, vector<8x47xf32>
    tpu.vector_store %arg8[%c0_17, %c0_18], %22 {strides = array<i32>} : memref<8x47xf32, #tpu.memory_space<vmem>>, vector<8x47xf32>,
    return
  }
  func.func @transform_0(%arg0: i32) -> (i32, i32) {
    %c0_i32 = arith.constant 0 : i32
    %c0_i32_0 = arith.constant 0 : i32
    return %arg0, %c0_i32 : i32, i32
  }
  func.func @transform_1(%arg0: i32) -> (i32, i32) {
    %c0_i32 = arith.constant 0 : i32
    %c0_i32_0 = arith.constant 0 : i32
    %c0_i32_1 = arith.constant 0 : i32
    return %c0_i32, %c0_i32_0 : i32, i32
  }
  func.func @transform_2(%arg0: i32) -> (i32, i32) {
    %c0_i32 = arith.constant 0 : i32
    %c0_i32_0 = arith.constant 0 : i32
    %c0_i32_1 = arith.constant 0 : i32
    return %c0_i32, %c0_i32_0 : i32, i32
  }
  func.func @transform_3(%arg0: i32) -> (i32, i32) {
    %c0_i32 = arith.constant 0 : i32
    %c0_i32_0 = arith.constant 0 : i32
    %c0_i32_1 = arith.constant 0 : i32
    return %c0_i32, %c0_i32_0 : i32, i32
  }
  func.func @transform_4(%arg0: i32) -> (i32, i32) {
    %c0_i32 = arith.constant 0 : i32
    %c0_i32_0 = arith.constant 0 : i32
    %c0_i32_1 = arith.constant 0 : i32
    return %c0_i32, %c0_i32_0 : i32, i32
  }
  func.func @transform_5(%arg0: i32) -> (i32, i32) {
    %c0_i32 = arith.constant 0 : i32
    %c0_i32_0 = arith.constant 0 : i32
    %c0_i32_1 = arith.constant 0 : i32
    return %c0_i32, %c0_i32_0 : i32, i32
  }
  func.func @transform_6(%arg0: i32) -> (i32, i32) {
    %c0_i32 = arith.constant 0 : i32
    %c0_i32_0 = arith.constant 0 : i32
    %c0_i32_1 = arith.constant 0 : i32
    return %c0_i32, %c0_i32_0 : i32, i32
  }
  func.func @transform_7(%arg0: i32) -> (i32, i32) {
    %c0_i32 = arith.constant 0 : i32
    %c0_i32_0 = arith.constant 0 : i32
    return %arg0, %c0_i32 : i32, i32
  }
}

</mosaic_0001>

<llo_original>
// kernel: video_classifier_forward.1
$region0: #{video_classifier_forward.1}
  #allocation0 [shape = 'u32[]', space=smem, size = 0x4, offset = 0x4, fixed_abs, tag = 'smem constant byte address 0x4 - core index']
  #allocation1 [shape = 'u32[144,128]{1,0:T(1,128)}', space=vmem, size = 0x12000, scoped, tag = 'internal scratch']
  %s0 = inlined_call_operand.vmem [shape: f32[8,384], index: 0, kind: input, shape index: {}]
  %s1 = inlined_call_operand.hbm [shape: bf16[384,128], index: 1, kind: input, shape index: {}]
  %s2 = inlined_call_operand.vmem [shape: f32[1,128], index: 2, kind: input, shape index: {}]
  %s3 = inlined_call_operand.vmem [shape: bf16[128,128], index: 3, kind: input, shape index: {}]
  %s4 = inlined_call_operand.vmem [shape: f32[1,128], index: 4, kind: input, shape index: {}]
  %s5 = inlined_call_operand.vmem [shape: bf16[128,47], index: 5, kind: input, shape index: {}]
  %s6 = inlined_call_operand.vmem [shape: f32[1,47], index: 6, kind: input, shape index: {}]
  %s7 = inlined_call_operand.hbm [shape: f32[8,47], index: 7, kind: output, shape index: {}]
  %s8 = sld [smem:[#allocation0]]
  $region42: #{video_classifier_forward.1} parent=0
    _
  %s10 = ssub.s32 1, %s8
  %s11 = scalar_select 0, %s10, %s8
  $region1: #{video_classifier_forward.1} parent=0
    #allocation2 [shape = 'u8[98304]{0}', space=vmem, size = 0x18000, scoped, tag = 'input window, operand 1, single buffered']
    #allocation3 [shape = 's32[1]{0}', space=sflag, size = 0x4, scoped, tag = 'scoped memory for video_classifier_forward.1']
    #allocation4 [shape = 's32[1]{0}', space=sflag, size = 0x4, scoped, tag = 'scoped memory for video_classifier_forward.1']
    #allocation5 [shape = 'u8[4096]{0}', space=vmem, size = 0x1000, scoped, tag = 'output window, operand 0, single buffered']
    %12 = vsyncpa [#allocation3], 0
    %13 = vsyncpa [#allocation4], 0
    // Predicated region
    $region2: #{video_classifier_forward.1} parent=1 // pred_check
      _
    $region3: #{video_classifier_forward.1} parent=1 // pred_check_branch
      %15 = sbr.rel (0) target = $region5
    $region4: #{video_classifier_forward.1} parent=1 // pred_region
      _
    $region5: #{video_classifier_forward.1} parent=1 // pred_fallthru
      _
    // Predicated region
    $region6: #{video_classifier_forward.1} parent=1 // pred_check
      _
    $region7: #{video_classifier_forward.1} parent=1 // pred_check_branch
      %17 = sbr.rel (0) target = $region9
    $region8: #{video_classifier_forward.1} parent=1 // pred_region
      %s19 = ssub.s32 3072, 3072
      %20 = vsyncadd [#allocation3], %s19
      %s21 = sshll.u32 [#allocation2], 4
      %s22 = int_to_ptr.vmem [resolvable:$true] %s21
      %27 = dma.hbm_to_vmem [thread:$0]  %s1, 3072, %s22, [#allocation3], 64, 64, 4
    $region9: #{video_classifier_forward.1} parent=1 // pred_fallthru
      _
    // Predicated region
    $region10: #{video_classifier_forward.1} parent=1 // pred_check
      _
    $region11: #{video_classifier_forward.1} parent=1 // pred_check_branch
      %29 = sbr.rel (0) target = $region13
    $region12: #{video_classifier_forward.1} parent=1 // pred_region
      _
    $region13: #{video_classifier_forward.1} parent=1 // pred_fallthru
      _
    // Predicated region
    $region14: #{video_classifier_forward.1} parent=1 // pred_check
      _
    $region15: #{video_classifier_forward.1} parent=1 // pred_check_branch
      %31 = sbr.rel (0) target = $region17
    $region16: #{video_classifier_forward.1} parent=1 // pred_region
      _
    $region17: #{video_classifier_forward.1} parent=1 // pred_fallthru
      _
    // Predicated region
    $region18: #{video_classifier_forward.1} parent=1 // pred_check
      _
    $region19: #{video_classifier_forward.1} parent=1 // pred_check_branch
      %33 = sbr.rel (0) target = $region21
    $region20: #{video_classifier_forward.1} parent=1 // pred_region
      _
    $region21: #{video_classifier_forward.1} parent=1 // pred_fallthru
      _
    // Predicated region
    $region22: #{video_classifier_forward.1} parent=1 // pred_check
      _
    $region23: #{video_classifier_forward.1} parent=1 // pred_check_branch
      %35 = sbr.rel (0) target = $region25
    $region24: #{video_classifier_forward.1} parent=1 // pred_region
      _
    $region25: #{video_classifier_forward.1} parent=1 // pred_fallthru
      _
    // Predicated region
    $region26: #{video_classifier_forward.1} parent=1 // pred_check
      _
    $region27: #{video_classifier_forward.1} parent=1 // pred_check_branch
      %37 = sbr.rel (0) target = $region29
    $region28: #{video_classifier_forward.1} parent=1 // pred_region
      _
    $region29: #{video_classifier_forward.1} parent=1 // pred_fallthru
      _
    // Predicated region
    $region30: #{video_classifier_forward.1} parent=1 // pred_check
      _
    $region31: #{video_classifier_forward.1} parent=1 // pred_check_branch
      %39 = sbr.rel (0) target = $region33
    $region32: #{video_classifier_forward.1} parent=1 // pred_region
      %40 = dma.done [#allocation3], 3072
    $region33: #{video_classifier_forward.1} parent=1 // pred_fallthru
      _
    %v42 = vld [vmem:[%s0] sm:$0xff]
    %v43 = vld [vmem:[%s0 + $0x8] sm:$0xff]
    %v44 = vld [vmem:[%s0 + $0x10] sm:$0xff]
    %v45 = vpack.c.bf16 %v42, %v42
    %v46 = vpack.c.bf16 %v43, %v43
    %v47 = vpack.c.bf16 %v44, %v44
    %v48 = vld [vmem:[#allocation2] sm:$0xf]
    %v49 = vld [vmem:[#allocation2 + $0x4] sm:$0xf]
    %v50 = vld [vmem:[#allocation2 + $0x8] sm:$0xf]
    %v51 = vld [vmem:[#allocation2 + $0xc] sm:$0xf]
    %v52 = vld [vmem:[#allocation2 + $0x10] sm:$0xf]
    %v53 = vld [vmem:[#allocation2 + $0x14] sm:$0xf]
    %v54 = vld [vmem:[#allocation2 + $0x18] sm:$0xf]
    %v55 = vld [vmem:[#allocation2 + $0x1c] sm:$0xf]
    %v56 = vld [vmem:[#allocation2 + $0x20] sm:$0xf]
    %v57 = vld [vmem:[#allocation2 + $0x24] sm:$0xf]
    %v58 = vld [vmem:[#allocation2 + $0x28] sm:$0xf]
    %v59 = vld [vmem:[#allocation2 + $0x2c] sm:$0xf]
    %v60 = vld [vmem:[#allocation2 + $0x30] sm:$0xf]
    %v61 = vld [vmem:[#allocation2 + $0x34] sm:$0xf]
    %v62 = vld [vmem:[#allocation2 + $0x38] sm:$0xf]
    %v63 = vld [vmem:[#allocation2 + $0x3c] sm:$0xf]
    %v64 = vld [vmem:[#allocation2 + $0x40] sm:$0xf]
    %v65 = vld [vmem:[#allocation2 + $0x44] sm:$0xf]
    %v66 = vld [vmem:[#allocation2 + $0x48] sm:$0xf]
    %v67 = vld [vmem:[#allocation2 + $0x4c] sm:$0xf]
    %v68 = vld [vmem:[#allocation2 + $0x50] sm:$0xf]
    %v69 = vld [vmem:[#allocation2 + $0x54] sm:$0xf]
    %v70 = vld [vmem:[#allocation2 + $0x58] sm:$0xf]
    %v71 = vld [vmem:[#allocation2 + $0x5c] sm:$0xf]
    %v72 = vld [vmem:[#allocation2 + $0x60] sm:$0xf]
    %v73 = vld [vmem:[#allocation2 + $0x64] sm:$0xf]
    %v74 = vld [vmem:[#allocation2 + $0x68] sm:$0xf]
    %v75 = vld [vmem:[#allocation2 + $0x6c] sm:$0xf]
    %v76 = vld [vmem:[#allocation2 + $0x70] sm:$0xf]
    %v77 = vld [vmem:[#allocation2 + $0x74] sm:$0xf]
    %v78 = vld [vmem:[#allocation2 + $0x78] sm:$0xf]
    %v79 = vld [vmem:[#allocation2 + $0x7c] sm:$0xf]
    %v80 = vld [vmem:[#allocation2 + $0x80] sm:$0xf]
    %v81 = vld [vmem:[#allocation2 + $0x84] sm:$0xf]
    %v82 = vld [vmem:[#allocation2 + $0x88] sm:$0xf]
    %v83 = vld [vmem:[#allocation2 + $0x8c] sm:$0xf]
    %v84 = vld [vmem:[#allocation2 + $0x90] sm:$0xf]
    %v85 = vld [vmem:[#allocation2 + $0x94] sm:$0xf]
    %v86 = vld [vmem:[#allocation2 + $0x98] sm:$0xf]
    %v87 = vld [vmem:[#allocation2 + $0x9c] sm:$0xf]
    %v88 = vld [vmem:[#allocation2 + $0xa0] sm:$0xf]
    %v89 = vld [vmem:[#allocation2 + $0xa4] sm:$0xf]
    %v90 = vld [vmem:[#allocation2 + $0xa8] sm:$0xf]
    %v91 = vld [vmem:[#allocation2 + $0xac] sm:$0xf]
    %v92 = vld [vmem:[#allocation2 + $0xb0] sm:$0xf]
    %v93 = vld [vmem:[#allocation2 + $0xb4] sm:$0xf]
    %v94 = vld [vmem:[#allocation2 + $0xb8] sm:$0xf]
    %v95 = vld [vmem:[#allocation2 + $0xbc] sm:$0xf]
    %v96 = vld [vmem:[%s2] sm:$0x1]
    %v98 = vlaneseq
    %v99 = vshrl.u32 %v98, 7
    %v100 = vsub.s32 0, %v99
    %v101 = vrot.slane %v96, %v100
    %v151 = vunpack.c.l.b16 %v48
    %v152 = vunpack.c.l.b16 %v49
    %v153 = vunpack.c.l.b16 %v50
    %v154 = vunpack.c.l.b16 %v51
    %v155 = vunpack.c.l.b16 %v52
    %v156 = vunpack.c.l.b16 %v53
    %v157 = vunpack.c.l.b16 %v54
    %v158 = vunpack.c.l.b16 %v55
    %v159 = vunpack.c.l.b16 %v56
    %v160 = vunpack.c.l.b16 %v57
    %v161 = vunpack.c.l.b16 %v58
    %v162 = vunpack.c.l.b16 %v59
    %v163 = vunpack.c.l.b16 %v60
    %v164 = vunpack.c.l.b16 %v61
    %v165 = vunpack.c.l.b16 %v62
    %v166 = vunpack.c.l.b16 %v63
    %v167 = vunpack.c.l.b16 %v64
    %v168 = vunpack.c.l.b16 %v65
    %v169 = vunpack.c.l.b16 %v66
    %v170 = vunpack.c.l.b16 %v67
    %v171 = vunpack.c.l.b16 %v68
    %v172 = vunpack.c.l.b16 %v69
    %v173 = vunpack.c.l.b16 %v70
    %v174 = vunpack.c.l.b16 %v71
    %v175 = vunpack.c.l.b16 %v72
    %v176 = vunpack.c.l.b16 %v73
    %v177 = vunpack.c.l.b16 %v74
    %v178 = vunpack.c.l.b16 %v75
    %v179 = vunpack.c.l.b16 %v76
    %v180 = vunpack.c.l.b16 %v77
    %v181 = vunpack.c.l.b16 %v78
    %v182 = vunpack.c.l.b16 %v79
    %v183 = vunpack.c.l.b16 %v80
    %v184 = vunpack.c.l.b16 %v81
    %v185 = vunpack.c.l.b16 %v82
    %v186 = vunpack.c.l.b16 %v83
    %v187 = vunpack.c.l.b16 %v84
    %v188 = vunpack.c.l.b16 %v85
    %v189 = vunpack.c.l.b16 %v86
    %v190 = vunpack.c.l.b16 %v87
    %v191 = vunpack.c.l.b16 %v88
    %v192 = vunpack.c.l.b16 %v89
    %v193 = vunpack.c.l.b16 %v90
    %v194 = vunpack.c.l.b16 %v91
    %v195 = vunpack.c.l.b16 %v92
    %v196 = vunpack.c.l.b16 %v93
    %v197 = vunpack.c.l.b16 %v94
    %v198 = vunpack.c.l.b16 %v95
    %v199 = vpack.c.b16 %v152, %v151
    %v200 = vpack.c.b16 %v154, %v153
    %v201 = vpack.c.b16 %v156, %v155
    %v202 = vpack.c.b16 %v158, %v157
    %v203 = vpack.c.b16 %v160, %v159
    %v204 = vpack.c.b16 %v162, %v161
    %v205 = vpack.c.b16 %v164, %v163
    %v206 = vpack.c.b16 %v166, %v165
    %v207 = vpack.c.b16 %v168, %v167
    %v208 = vpack.c.b16 %v170, %v169
    %v209 = vpack.c.b16 %v172, %v171
    %v210 = vpack.c.b16 %v174, %v173
    %v211 = vpack.c.b16 %v176, %v175
    %v212 = vpack.c.b16 %v178, %v177
    %v213 = vpack.c.b16 %v180, %v179
    %v214 = vpack.c.b16 %v182, %v181
    %v215 = vpack.c.b16 %v184, %v183
    %v216 = vpack.c.b16 %v186, %v185
    %v217 = vpack.c.b16 %v188, %v187
    %v218 = vpack.c.b16 %v190, %v189
    %v219 = vpack.c.b16 %v192, %v191
    %v220 = vpack.c.b16 %v194, %v193
    %v221 = vpack.c.b16 %v196, %v195
    %v222 = vpack.c.b16 %v198, %v197
    %247 = vmatprep.subr.bf16.mxu0 0
    %248 = vmatpush1.bf16.msra.mxu0 %v199
    %249 = vmatprep.subr.bf16.mxu0 0
    %250 = vmatpush1.bf16.msra.mxu0 %v200
    %251 = vmatprep.subr.bf16.mxu0 0
    %252 = vmatpush1.bf16.msra.mxu0 %v201
    %253 = vmatprep.subr.bf16.mxu0 0
    %254 = vmatpush1.bf16.msra.mxu0 %v202
    %255 = vmatprep.subr.bf16.mxu0 0
    %256 = vmatpush1.bf16.msra.mxu0 %v203
    %257 = vmatprep.subr.bf16.mxu0 0
    %258 = vmatpush1.bf16.msra.mxu0 %v204
    %259 = vmatprep.subr.bf16.mxu0 0
    %260 = vmatpush1.bf16.msra.mxu0 %v205
    %261 = vmatprep.subr.bf16.mxu0 0
    %262 = vmatpush1.bf16.msra.mxu0 %v206
    %263 = vmatprep.subr.bf16.mxu0 0
    %264 = vmatpush1.bf16.msra.mxu0 %v207
    %265 = vmatprep.subr.bf16.mxu0 0
    %266 = vmatpush1.bf16.msra.mxu0 %v208
    %267 = vmatprep.subr.bf16.mxu0 0
    %268 = vmatpush1.bf16.msra.mxu0 %v209
    %269 = vmatprep.subr.bf16.mxu0 0
    %270 = vmatpush1.bf16.msra.mxu0 %v210
    %271 = vmatprep.subr.bf16.mxu0 0
    %272 = vmatpush1.bf16.msra.mxu0 %v211
    %273 = vmatprep.subr.bf16.mxu0 0
    %274 = vmatpush1.bf16.msra.mxu0 %v212
    %275 = vmatprep.subr.bf16.mxu0 0
    %276 = vmatpush1.bf16.msra.mxu0 %v213
    %277 = vmatprep.subr.bf16.mxu0 0
    %278 = vmatpush1.bf16.msra.mxu0 %v214
    %279 = vmatprep.mubr.bf16.mxu0 %v46
    %280 = vmatmul.mubr.bf16.gmra.mrb[0].mxu0 %v45
    %v281 = vpop.f32.mrb[0].mxu0
    %v282 = vadd.f32 %v101, %v281
    %v283 = vpop.f32.mrb[0].mxu0
    %v284 = vpop.f32.mrb[0].mxu0
    %v285 = vpop.f32.mrb[0].mxu0
    %286 = vdwg.mxu0
    %287 = vmatprep.subr.bf16.mxu0 0
    %288 = vmatpush1.bf16.msra.mxu0 %v215
    %289 = vmatprep.subr.bf16.mxu0 0
    %290 = vmatpush1.bf16.msra.mxu0 %v216
    %291 = vmatprep.subr.bf16.mxu0 0
    %292 = vmatpush1.bf16.msra.mxu0 %v217
    %293 = vmatprep.subr.bf16.mxu0 0
    %294 = vmatpush1.bf16.msra.mxu0 %v218
    %295 = vmatprep.subr.bf16.mxu0 0
    %296 = vmatpush1.bf16.msra.mxu0 %v219
    %297 = vmatprep.subr.bf16.mxu0 0
    %298 = vmatpush1.bf16.msra.mxu0 %v220
    %299 = vmatprep.subr.bf16.mxu0 0
    %300 = vmatpush1.bf16.msra.mxu0 %v221
    %301 = vmatprep.subr.bf16.mxu0 0
    %302 = vmatpush1.bf16.msra.mxu0 %v222
    %303 = vmatprep.subr.bf16.mxu0 0
    %304 = vmatpush1.bf16.msra.mxu0 0
    %305 = vmatprep.subr.bf16.mxu0 0
    %306 = vmatpush1.bf16.msra.mxu0 0
    %307 = vmatprep.subr.bf16.mxu0 0
    %308 = vmatpush1.bf16.msra.mxu0 0
    %309 = vmatprep.subr.bf16.mxu0 0
    %310 = vmatpush1.bf16.msra.mxu0 0
    %311 = vmatprep.subr.bf16.mxu0 0
    %312 = vmatpush1.bf16.msra.mxu0 0
    %313 = vmatprep.subr.bf16.mxu0 0
    %314 = vmatpush1.bf16.msra.mxu0 0
    %315 = vmatprep.subr.bf16.mxu0 0
    %316 = vmatpush1.bf16.msra.mxu0 0
    %317 = vmatprep.subr.bf16.mxu0 0
    %318 = vmatpush1.bf16.msra.mxu0 0
    %319 = vmatprep.mubr.bf16.mxu0 0
    %320 = vmatmul.mubr.bf16.gmra.mrb[0].mxu0 %v47
    %v321 = vpop.f32.mrb[0].mxu0
    %v322 = vadd.f32 %v282, %v321
    %v323 = vpop.f32.mrb[0].mxu0
    %v324 = vpop.f32.mrb[0].mxu0
    %v325 = vpop.f32.mrb[0].mxu0
    %326 = vdwg.mxu0
    %v327 = vmax.f32 %v322, 0.0
    %v328 = vpack.c.bf16 %v327, %v327
    %v329 = vld [vmem:[%s3] sm:$0xf]
    %v330 = vld [vmem:[%s3 + $0x4] sm:$0xf]
    %v331 = vld [vmem:[%s3 + $0x8] sm:$0xf]
    %v332 = vld [vmem:[%s3 + $0xc] sm:$0xf]
    %v333 = vld [vmem:[%s3 + $0x10] sm:$0xf]
    %v334 = vld [vmem:[%s3 + $0x14] sm:$0xf]
    %v335 = vld [vmem:[%s3 + $0x18] sm:$0xf]
    %v336 = vld [vmem:[%s3 + $0x1c] sm:$0xf]
    %v337 = vld [vmem:[%s3 + $0x20] sm:$0xf]
    %v338 = vld [vmem:[%s3 + $0x24] sm:$0xf]
    %v339 = vld [vmem:[%s3 + $0x28] sm:$0xf]
    %v340 = vld [vmem:[%s3 + $0x2c] sm:$0xf]
    %v341 = vld [vmem:[%s3 + $0x30] sm:$0xf]
    %v342 = vld [vmem:[%s3 + $0x34] sm:$0xf]
    %v343 = vld [vmem:[%s3 + $0x38] sm:$0xf]
    %v344 = vld [vmem:[%s3 + $0x3c] sm:$0xf]
    %v345 = vld [vmem:[%s4] sm:$0x1]
    %v347 = vlaneseq
    %v348 = vshrl.u32 %v347, 7
    %v349 = vsub.s32 0, %v348
    %v350 = vrot.slane %v345, %v349
    %v368 = vunpack.c.l.b16 %v329
    %v369 = vunpack.c.l.b16 %v330
    %v370 = vunpack.c.l.b16 %v331
    %v371 = vunpack.c.l.b16 %v332
    %v372 = vunpack.c.l.b16 %v333
    %v373 = vunpack.c.l.b16 %v334
    %v374 = vunpack.c.l.b16 %v335
    %v375 = vunpack.c.l.b16 %v336
    %v376 = vunpack.c.l.b16 %v337
    %v377 = vunpack.c.l.b16 %v338
    %v378 = vunpack.c.l.b16 %v339
    %v379 = vunpack.c.l.b16 %v340
    %v380 = vunpack.c.l.b16 %v341
    %v381 = vunpack.c.l.b16 %v342
    %v382 = vunpack.c.l.b16 %v343
    %v383 = vunpack.c.l.b16 %v344
    %v384 = vpack.c.b16 %v369, %v368
    %v385 = vpack.c.b16 %v371, %v370
    %v386 = vpack.c.b16 %v373, %v372
    %v387 = vpack.c.b16 %v375, %v374
    %v388 = vpack.c.b16 %v377, %v376
    %v389 = vpack.c.b16 %v379, %v378
    %v390 = vpack.c.b16 %v381, %v380
    %v391 = vpack.c.b16 %v383, %v382
    %400 = vmatprep.subr.bf16.mxu0 0
    %401 = vmatpush1.bf16.msra.mxu0 %v384
    %402 = vmatprep.subr.bf16.mxu0 0
    %403 = vmatpush1.bf16.msra.mxu0 %v385
    %404 = vmatprep.subr.bf16.mxu0 0
    %405 = vmatpush1.bf16.msra.mxu0 %v386
    %406 = vmatprep.subr.bf16.mxu0 0
    %407 = vmatpush1.bf16.msra.mxu0 %v387
    %408 = vmatprep.subr.bf16.mxu0 0
    %409 = vmatpush1.bf16.msra.mxu0 %v388
    %410 = vmatprep.subr.bf16.mxu0 0
    %411 = vmatpush1.bf16.msra.mxu0 %v389
    %412 = vmatprep.subr.bf16.mxu0 0
    %413 = vmatpush1.bf16.msra.mxu0 %v390
    %414 = vmatprep.subr.bf16.mxu0 0
    %415 = vmatpush1.bf16.msra.mxu0 %v391
    %416 = vmatprep.subr.bf16.mxu0 0
    %417 = vmatpush1.bf16.msra.mxu0 0
    %418 = vmatprep.subr.bf16.mxu0 0
    %419 = vmatpush1.bf16.msra.mxu0 0
    %420 = vmatprep.subr.bf16.mxu0 0
    %421 = vmatpush1.bf16.msra.mxu0 0
    %422 = vmatprep.subr.bf16.mxu0 0
    %423 = vmatpush1.bf16.msra.mxu0 0
    %424 = vmatprep.subr.bf16.mxu0 0
    %425 = vmatpush1.bf16.msra.mxu0 0
    %426 = vmatprep.subr.bf16.mxu0 0
    %427 = vmatpush1.bf16.msra.mxu0 0
    %428 = vmatprep.subr.bf16.mxu0 0
    %429 = vmatpush1.bf16.msra.mxu0 0
    %430 = vmatprep.subr.bf16.mxu0 0
    %431 = vmatpush1.bf16.msra.mxu0 0
    %432 = vmatprep.mubr.bf16.mxu0 0
    %433 = vmatmul.mubr.bf16.gmra.mrb[0].mxu0 %v328
    %v434 = vpop.f32.mrb[0].mxu0
    %v435 = vadd.f32 %v350, %v434
    %v436 = vpop.f32.mrb[0].mxu0
    %v437 = vpop.f32.mrb[0].mxu0
    %v438 = vpop.f32.mrb[0].mxu0
    %439 = vdwg.mxu0
    %v440 = vmax.f32 %v435, 0.0
    %v441 = vpack.c.bf16 %v440, %v440
    %v442 = vld [vmem:[%s5] sm:$0xf]
    %v443 = vld [vmem:[%s5 + $0x4] sm:$0xf]
    %v444 = vld [vmem:[%s5 + $0x8] sm:$0xf]
    %v445 = vld [vmem:[%s5 + $0xc] sm:$0xf]
    %v446 = vld [vmem:[%s5 + $0x10] sm:$0xf]
    %v447 = vld [vmem:[%s5 + $0x14] sm:$0xf]
    %v448 = vld [vmem:[%s5 + $0x18] sm:$0xf]
    %v449 = vld [vmem:[%s5 + $0x1c] sm:$0xf]
    %v450 = vld [vmem:[%s5 + $0x20] sm:$0xf]
    %v451 = vld [vmem:[%s5 + $0x24] sm:$0xf]
    %v452 = vld [vmem:[%s5 + $0x28] sm:$0xf]
    %v453 = vld [vmem:[%s5 + $0x2c] sm:$0xf]
    %v454 = vld [vmem:[%s5 + $0x30] sm:$0xf]
    %v455 = vld [vmem:[%s5 + $0x34] sm:$0xf]
    %v456 = vld [vmem:[%s5 + $0x38] sm:$0xf]
    %v457 = vld [vmem:[%s5 + $0x3c] sm:$0xf]
    %v458 = vld [vmem:[%s6] sm:$0x1]
    %v460 = vlaneseq
    %v461 = vshrl.u32 %v460, 7
    %v462 = vsub.s32 0, %v461
    %v463 = vrot.slane %v458, %v462
    %v481 = vunpack.c.l.b16 %v442
    %v482 = vunpack.c.l.b16 %v443
    %v483 = vunpack.c.l.b16 %v444
    %v484 = vunpack.c.l.b16 %v445
    %v485 = vunpack.c.l.b16 %v446
    %v486 = vunpack.c.l.b16 %v447
    %v487 = vunpack.c.l.b16 %v448
    %v488 = vunpack.c.l.b16 %v449
    %v489 = vunpack.c.l.b16 %v450
    %v490 = vunpack.c.l.b16 %v451
    %v491 = vunpack.c.l.b16 %v452
    %v492 = vunpack.c.l.b16 %v453
    %v493 = vunpack.c.l.b16 %v454
    %v494 = vunpack.c.l.b16 %v455
    %v495 = vunpack.c.l.b16 %v456
    %v496 = vunpack.c.l.b16 %v457
    %v497 = vpack.c.b16 %v482, %v481
    %v498 = vpack.c.b16 %v484, %v483
    %v499 = vpack.c.b16 %v486, %v485
    %v500 = vpack.c.b16 %v488, %v487
    %v501 = vpack.c.b16 %v490, %v489
    %v502 = vpack.c.b16 %v492, %v491
    %v503 = vpack.c.b16 %v494, %v493
    %v504 = vpack.c.b16 %v496, %v495
    %513 = vmatprep.subr.bf16.mxu0 0
    %514 = vmatpush1.bf16.msra.mxu0 %v497
    %515 = vmatprep.subr.bf16.mxu0 0
    %516 = vmatpush1.bf16.msra.mxu0 %v498
    %517 = vmatprep.subr.bf16.mxu0 0
    %518 = vmatpush1.bf16.msra.mxu0 %v499
    %519 = vmatprep.subr.bf16.mxu0 0
    %520 = vmatpush1.bf16.msra.mxu0 %v500
    %521 = vmatprep.subr.bf16.mxu0 0
    %522 = vmatpush1.bf16.msra.mxu0 %v501
    %523 = vmatprep.subr.bf16.mxu0 0
    %524 = vmatpush1.bf16.msra.mxu0 %v502
    %525 = vmatprep.subr.bf16.mxu0 0
    %526 = vmatpush1.bf16.msra.mxu0 %v503
    %527 = vmatprep.subr.bf16.mxu0 0
    %528 = vmatpush1.bf16.msra.mxu0 %v504
    %529 = vmatprep.subr.bf16.mxu0 0
    %530 = vmatpush1.bf16.msra.mxu0 0
    %531 = vmatprep.subr.bf16.mxu0 0
    %532 = vmatpush1.bf16.msra.mxu0 0
    %533 = vmatprep.subr.bf16.mxu0 0
    %534 = vmatpush1.bf16.msra.mxu0 0
    %535 = vmatprep.subr.bf16.mxu0 0
    %536 = vmatpush1.bf16.msra.mxu0 0
    %537 = vmatprep.subr.bf16.mxu0 0
    %538 = vmatpush1.bf16.msra.mxu0 0
    %539 = vmatprep.subr.bf16.mxu0 0
    %540 = vmatpush1.bf16.msra.mxu0 0
    %541 = vmatprep.subr.bf16.mxu0 0
    %542 = vmatpush1.bf16.msra.mxu0 0
    %543 = vmatprep.subr.bf16.mxu0 0
    %544 = vmatpush1.bf16.msra.mxu0 0
    %545 = vmatprep.mubr.bf16.mxu0 0
    %546 = vmatmul.mubr.bf16.gmra.mrb[0].mxu0 %v441
    %v547 = vpop.f32.mrb[0].mxu0
    %v548 = vadd.f32 %v463, %v547
    %v549 = vpop.f32.mrb[0].mxu0
    %v550 = vpop.f32.mrb[0].mxu0
    %v551 = vpop.f32.mrb[0].mxu0
    %552 = vdwg.mxu0
    %vm553 = vcmask 384000
    %554 = vst.msk [vmem:[#allocation5] sm:$0xff] %vm553, %v548
    // Predicated region
    $region34: #{video_classifier_forward.1} parent=1 // pred_check
      _
    $region35: #{video_classifier_forward.1} parent=1 // pred_check_branch
      %556 = sbr.rel (0) target = $region37
    $region36: #{video_classifier_forward.1} parent=1 // pred_region
      %s558 = ssub.s32 128, 128
      %559 = vsyncadd [#allocation4], %s558
      %s561 = sshll.u32 [#allocation5], 4
      %s562 = int_to_ptr.vmem [resolvable:$true] %s561
      %564 = dma.vmem_to_hbm [thread:$0]  %s562, 128, %s7, [#allocation4]
    $region37: #{video_classifier_forward.1} parent=1 // pred_fallthru
      _
    // Predicated region
    $region38: #{video_classifier_forward.1} parent=1 // pred_check
      _
    $region39: #{video_classifier_forward.1} parent=1 // pred_check_branch
      %566 = sbr.rel (0) target = $region41
    $region40: #{video_classifier_forward.1} parent=1 // pred_region
      %567 = dma.done [#allocation4], 128
    $region41: #{video_classifier_forward.1} parent=1 // pred_fallthru
      _
    %568 = vsyncpa [#allocation3], 1
    %569 = vsyncpa [#allocation4], 1

</llo_original>
